<compile_context>
chip_gen: v7x
topology: tpu7x:2x2x1
jax: 0.10.0
libtpu: 0.0.40
codegen_flags: <defaults>
</compile_context>

<pallas_src>
import jax
import jax.numpy as jnp
from jax.experimental import pallas as pl
from jax.experimental.pallas import tpu as pltpu


_ROW_TILE = 256        # multiple of 8 (f32) / 16 (bf16) / 32 (int8) sublane packing
_TILE_BYTES = 1 << 20  # ~1 MiB per buffer tile: near roofline, VMEM-safe everywhere


def _chomp_kernel(x_ref, o_ref):
    # x_ref: (TR, TL_in), o_ref: (TR, TL_out) with TL_out <= TL_in (both static).
    o_ref[...] = x_ref[:, : o_ref.shape[-1]]


def chomp1d(x: jax.Array, chomp_size: int) -> jax.Array:
    """Pallas implementation of Chomp1d.forward: x[:, :, :-chomp_size]."""
    assert chomp_size > 0, "chomp_size must be positive (matches x[:, :, :-c])"
    n, c, l = x.shape
    l_out = l - chomp_size
    assert l_out > 0, "chomp_size must be smaller than the time dimension"

    rows = n * c
    x2 = x.reshape(rows, l)  # free reshape: (N, C, L) is contiguous
    itemsize = jnp.dtype(x.dtype).itemsize

    if l_out >= 512:
        # Lane-dense 2-D tiling for long sequences.
        tr = rows if rows <= _ROW_TILE else _ROW_TILE
        # Largest 128-multiple lane tile that keeps one buffer around _TILE_BYTES,
        # but never wider than l_out rounded up to 128 (no useless column blocks).
        lane_budget = max(128, (_TILE_BYTES // max(tr * itemsize, 1)) // 128 * 128)
        l_out_pad = pl.cdiv(l_out, 128) * 128
        tl = min(lane_budget, l_out_pad)

        grid = (pl.cdiv(rows, tr), pl.cdiv(l_out, tl))
        in_specs = [pl.BlockSpec((tr, tl), lambda i, j: (i, j))]
        out_specs = pl.BlockSpec((tr, tl), lambda i, j: (i, j))
        dims = ("parallel", "parallel")
    else:
        # Short sequences: full time extent per block; cap the row tile so a
        # double-buffered input + output stays well inside default scoped VMEM.
        cap = (_TILE_BYTES // max(l * itemsize, 1)) // 32 * 32
        cap = max(cap, 8)
        tr = rows if rows <= cap else cap

        grid = (pl.cdiv(rows, tr),)
        in_specs = [pl.BlockSpec((tr, l), lambda i: (i, 0))]
        out_specs = pl.BlockSpec((tr, l_out), lambda i: (i, 0))
        dims = ("parallel",)

    out2 = pl.pallas_call(
        _chomp_kernel,
        out_shape=jax.ShapeDtypeStruct((rows, l_out), x.dtype),
        grid_spec=pltpu.PrefetchScalarGridSpec(
            num_scalar_prefetch=0,
            grid=grid,
            in_specs=in_specs,
            out_specs=out_specs,
        ),
        compiler_params=pltpu.CompilerParams(dimension_semantics=dims),
    )(x2)
    return out2.reshape(n, c, l_out)


if __name__ == "__main__":
    key = jax.random.PRNGKey(0)
    k1, k2, k3 = jax.random.split(key, 3)

    # Small shape consistent with a TCN residual branch: batch=2, channels=4, L=16.
    N, C, L = 2, 4, 16
    chomp_size = 3  # (kernel_size - 1) * dilation for kernel_size=4, dilation=1
    x = jax.random.normal(k1, (N, C, L), dtype=jnp.float32)

    y = jax.block_until_ready(chomp1d(x, chomp_size))
    ref = x[:, :, :-chomp_size]
    assert y.shape == (N, C, L - chomp_size)
    assert jnp.array_equal(y, ref)

    # Lane-dense 2-D tiled path, 128-multiple output length.
    x_long = jax.random.normal(k2, (2, 64, 2048 + 3), dtype=jnp.float32)
    y_long = jax.block_until_ready(chomp1d(x_long, 3))
    assert jnp.array_equal(y_long, x_long[:, :, :-3])

    # Tiled path with a non-128-multiple output length (masked tail block) in bf16.
    x_odd = jax.random.normal(k3, (2, 8, 777), dtype=jnp.float32).astype(jnp.bfloat16)
    y_odd = jax.block_until_ready(chomp1d(x_odd, 5))
    assert jnp.array_equal(y_odd, x_odd[:, :, :-5])

    print("KERNEL_OK")
</pallas_src>

<mosaic_0001>
module attributes {stable_mosaic.version = 11 : i64} {
  func.func @_chomp_kernel(%arg0: i32, %arg1: memref<8x16xf32, #tpu.memory_space<vmem>>, %arg2: memref<8x13xf32, #tpu.memory_space<vmem>>) attributes {dimension_semantics = [#tpu.dimension_semantics<parallel>], iteration_bounds = array<i64: 1>, scalar_prefetch = 0 : i64, scratch_operands = 0 : i64, tpu.core_type = #tpu.core_type<tc>, window_params = [{transform_indices = @transform_0, window_bounds = array<i64: 8, 16>}, {transform_indices = @transform_1, window_bounds = array<i64: 8, 13>}]} {
    %c0 = arith.constant 0 : index
    %c0_0 = arith.constant 0 : index
    %0 = vector.load %arg1[%c0, %c0_0] : memref<8x16xf32, #tpu.memory_space<vmem>>, vector<8x13xf32>
    %c0_1 = arith.constant 0 : index
    %c0_2 = arith.constant 0 : index
    %1 = vector.load %arg2[%c0_1, %c0_2] : memref<8x13xf32, #tpu.memory_space<vmem>>, vector<8x13xf32>
    tpu.vector_store %arg2[%c0_1, %c0_2], %0 {strides = array<i32>} : memref<8x13xf32, #tpu.memory_space<vmem>>, vector<8x13xf32>,
    return
  }
  func.func @transform_0(%arg0: i32) -> (i32, i32) {
    %c0_i32 = arith.constant 0 : i32
    %c0_i32_0 = arith.constant 0 : i32
    return %arg0, %c0_i32 : i32, i32
  }
  func.func @transform_1(%arg0: i32) -> (i32, i32) {
    %c0_i32 = arith.constant 0 : i32
    %c0_i32_0 = arith.constant 0 : i32
    return %arg0, %c0_i32 : i32, i32
  }
}

</mosaic_0001>

<llo_original>
// kernel: tpu_custom_call.1
$region0: #{tpu_custom_call.1}
  #allocation0 [shape = 'u32[]', space=smem, size = 0x4, offset = 0x4, fixed_abs, tag = 'smem constant byte address 0x4 - core index']
  #allocation1 [shape = 'u32[144,128]{1,0:T(1,128)}', space=vmem, size = 0x12000, scoped, tag = 'internal scratch']
  %s0 = inlined_call_operand.hbm [shape: f32[8,16], index: 0, kind: input, shape index: {}]
  %s1 = inlined_call_operand.hbm [shape: f32[8,13], index: 1, kind: output, shape index: {}]
  %s2 = sld [smem:[#allocation0]]
  $region18: #{tpu_custom_call.1} parent=0
    _
  %s4 = ssub.s32 1, %s2
  %s5 = scalar_select 0, %s4, %s2
  $region1: #{tpu_custom_call.1} parent=0
    #allocation2 [shape = 'u8[4096]{0}', space=vmem, size = 0x1000, scoped, tag = 'input window, operand 0, single buffered']
    #allocation3 [shape = 's32[1]{0}', space=sflag, size = 0x4, scoped, tag = 'scoped memory for tpu_custom_call.1']
    #allocation4 [shape = 's32[1]{0}', space=sflag, size = 0x4, scoped, tag = 'scoped memory for tpu_custom_call.1']
    #allocation5 [shape = 'u8[4096]{0}', space=vmem, size = 0x1000, scoped, tag = 'output window, operand 0, single buffered']
    %6 = vsyncpa [#allocation3], 0
    %7 = vsyncpa [#allocation4], 0
    // Predicated region
    $region2: #{tpu_custom_call.1} parent=1 // pred_check
      _
    $region3: #{tpu_custom_call.1} parent=1 // pred_check_branch
      %9 = sbr.rel (0) target = $region5
    $region4: #{tpu_custom_call.1} parent=1 // pred_region
      %s11 = ssub.s32 128, 128
      %12 = vsyncadd [#allocation3], %s11
      %s14 = sshll.u32 [#allocation2], 4
      %s15 = int_to_ptr.vmem [resolvable:$true] %s14
      %17 = dma.hbm_to_vmem [thread:$0]  %s0, 128, %s15, [#allocation3]
    $region5: #{tpu_custom_call.1} parent=1 // pred_fallthru
      _
    // Predicated region
    $region6: #{tpu_custom_call.1} parent=1 // pred_check
      _
    $region7: #{tpu_custom_call.1} parent=1 // pred_check_branch
      %19 = sbr.rel (0) target = $region9
    $region8: #{tpu_custom_call.1} parent=1 // pred_region
      %20 = dma.done [#allocation3], 128
    $region9: #{tpu_custom_call.1} parent=1 // pred_fallthru
      _
    %v21 = vld [vmem:[#allocation2] sm:$0xff]
    %vm22 = vcmask 105472
    %23 = vst.msk [vmem:[#allocation5] sm:$0xff] %vm22, %v21
    // Predicated region
    $region10: #{tpu_custom_call.1} parent=1 // pred_check
      _
    $region11: #{tpu_custom_call.1} parent=1 // pred_check_branch
      %25 = sbr.rel (0) target = $region13
    $region12: #{tpu_custom_call.1} parent=1 // pred_region
      %s27 = ssub.s32 128, 128
      %28 = vsyncadd [#allocation4], %s27
      %s30 = sshll.u32 [#allocation5], 4
      %s31 = int_to_ptr.vmem [resolvable:$true] %s30
      %33 = dma.vmem_to_hbm [thread:$0]  %s31, 128, %s1, [#allocation4]
    $region13: #{tpu_custom_call.1} parent=1 // pred_fallthru
      _
    // Predicated region
    $region14: #{tpu_custom_call.1} parent=1 // pred_check
      _
    $region15: #{tpu_custom_call.1} parent=1 // pred_check_branch
      %35 = sbr.rel (0) target = $region17
    $region16: #{tpu_custom_call.1} parent=1 // pred_region
      %36 = dma.done [#allocation4], 128
    $region17: #{tpu_custom_call.1} parent=1 // pred_fallthru
      _
    %37 = vsyncpa [#allocation3], 1
    %38 = vsyncpa [#allocation4], 1

</llo_original>
